<compile_context>
chip_gen: v5e
topology: v5e:2x2
jax: 0.10.0
libtpu: 0.0.40
codegen_flags: <defaults>
</compile_context>

<pallas_src>
import functools

import jax
import jax.numpy as jnp
from jax import lax
from jax.experimental import pallas as pl
from jax.experimental.pallas import tpu as pltpu

# ----------------------------------------------------------------------------
# config (faithful to the module's hard-coded channel sizes)
# ----------------------------------------------------------------------------
LAYERS = [1, 1, 1, 1]          # blocks per ResNet stage
NUM_CLASSES = 6
DILATE_SCALE = 16              # module default
BN_EPS = 1e-5
ASPP_RATES = (3, 2, 6, 12, 18)  # _ASPPModule_v2 with os=8

M_CAP, K_CAP, N_CAP = 256, 6144, 512        # matmul tile caps
_VMEM_LIMIT = 48 * 1024 * 1024              # fits v5e/v6e/v7x scoped VMEM


def _round_up(x, m):
    return (x + m - 1) // m * m


def _pick_tiles(d, cap, align):
    """(padded_dim, tile): padded % tile == 0, tile <= cap, minimal padding."""
    dp = _round_up(d, align)
    steps = max(1, -(-dp // cap))
    tile = _round_up(-(-dp // steps), align)
    return tile * steps, tile


# ----------------------------------------------------------------------------
# Pallas matmul kernel with fused BN-affine / activation / residual epilogue
# ----------------------------------------------------------------------------
def _mm_kernel(*refs, act, res_mode):
    """Tiled matmul (bf16 operands, f32 acc) with fused affine/act/residual."""
    if res_mode is None:
        a_ref, b_ref, sb_ref, o_ref, acc_ref = refs
        r_ref = None
    else:
        a_ref, b_ref, sb_ref, r_ref, o_ref, acc_ref = refs

    @pl.when(pl.program_id(2) == 0)
    def _():
        acc_ref[...] = jnp.zeros_like(acc_ref)

    acc_ref[...] += jnp.dot(a_ref[...], b_ref[...],
                            preferred_element_type=jnp.float32)

    @pl.when(pl.program_id(2) == pl.num_programs(2) - 1)
    def _():
        # epilogue kept fully in f32 (v5e has no bf16 VPU/EUP path)
        y = acc_ref[...] * sb_ref[0:1, :] + sb_ref[1:2, :]
        if res_mode == "add_then_act":
            y = y + r_ref[...]
        if act == "relu":
            y = jnp.maximum(y, 0.0)
        elif act == "sigmoid":
            y = jax.nn.sigmoid(y)
        if res_mode == "act_then_add":
            y = y + r_ref[...]
        o_ref[...] = y.astype(o_ref.dtype)


def matmul_fused(a, w_p, sb_p, *, cout, act=None, residual=None, res_mode=None):
    """y[:M,:cout] = epilogue(a @ w_p).

    a    : (M, Kp) bf16 (K already zero-padded to the packed Kp)
    w_p  : (Kp, Np) bf16, pre-packed/padded once at init
    sb_p : (2, Np) f32  packed (scale, bias)
    """
    M, Kp = a.shape
    kp_w, Np = w_p.shape
    assert Kp == kp_w, (Kp, kp_w)
    Mp, bm = _pick_tiles(M, M_CAP, 16)
    _, bk = _pick_tiles(Kp, K_CAP, 128)
    _, bn = _pick_tiles(Np, N_CAP, 128)
    # v7x megacore: if both "parallel" axes would have one tile, split N in two
    if Mp == bm and Np == bn and Np >= 256 and Np % 256 == 0:
        bn = Np // 2

    if Mp == M and a.dtype == jnp.bfloat16:
        a_p = a
    else:
        a_p = jnp.pad(a.astype(jnp.bfloat16), ((0, Mp - M), (0, 0)))

    inputs = [a_p, w_p, sb_p]
    in_specs = [
        pl.BlockSpec((bm, bk), lambda i, j, k: (i, k)),
        pl.BlockSpec((bk, bn), lambda i, j, k: (k, j)),
        pl.BlockSpec((2, bn), lambda i, j, k: (0, j)),
    ]
    if residual is not None:
        assert res_mode in ("add_then_act", "act_then_add")
        r_p = jnp.pad(residual.astype(jnp.float32),
                      ((0, Mp - M), (0, Np - residual.shape[1])))
        inputs.append(r_p)
        in_specs.append(pl.BlockSpec((bm, bn), lambda i, j, k: (i, j)))
    else:
        res_mode = None

    grid = (Mp // bm, Np // bn, Kp // bk)
    out = pl.pallas_call(
        functools.partial(_mm_kernel, act=act, res_mode=res_mode),
        out_shape=jax.ShapeDtypeStruct((Mp, Np), jnp.float32),
        grid_spec=pltpu.PrefetchScalarGridSpec(
            num_scalar_prefetch=0,
            grid=grid,
            in_specs=in_specs,
            out_specs=pl.BlockSpec((bm, bn), lambda i, j, k: (i, j)),
            scratch_shapes=[pltpu.VMEM((bm, bn), jnp.float32)],
        ),
        compiler_params=pltpu.CompilerParams(
            dimension_semantics=("parallel", "parallel", "arbitrary"),
            vmem_limit_bytes=_VMEM_LIMIT),
    )(*inputs)

    if Mp == M and Np == cout:
        return out
    return out[:M, :cout]


# ----------------------------------------------------------------------------
# conv glue (data movement in JAX, all MACs in the Pallas matmul kernel)
# ----------------------------------------------------------------------------
def _im2col_bf16(x, kh, kw, stride, padding, dilation, kp):
    """A:(N*oh*ow, kp) bf16 with the K zero-padding folded into one concat."""
    xb = x.astype(jnp.bfloat16)
    n, h, w, c = xb.shape
    if padding:
        xb = jnp.pad(xb, ((0, 0), (padding, padding), (padding, padding), (0, 0)))
    hp, wp = h + 2 * padding, w + 2 * padding
    oh = (hp - dilation * (kh - 1) - 1) // stride + 1
    ow = (wp - dilation * (kw - 1) - 1) // stride + 1
    cols = []
    for i in range(kh):
        for j in range(kw):
            cols.append(xb[:, i * dilation:i * dilation + (oh - 1) * stride + 1:stride,
                              j * dilation:j * dilation + (ow - 1) * stride + 1:stride, :])
    k = kh * kw * c
    if kp > k:
        cols.append(jnp.zeros((n, oh, ow, kp - k), jnp.bfloat16))
    a = cols[0] if len(cols) == 1 else jnp.concatenate(cols, axis=-1)
    return a.reshape(n * oh * ow, kp), oh, ow


def conv2d(x, cp, *, stride=1, padding=0, dilation=1, act=None,
           residual=None, res_mode=None):
    """x: (N,H,W,Cin) NHWC; cp: packed conv params from init_params."""
    n, h, w, _ = x.shape
    kh, kw, cin, cout = cp["kh"], cp["kw"], cp["cin"], cp["cout"]
    degenerate = ("wc" in cp and kh == 3 and kw == 3 and stride == 1
                  and padding == dilation and dilation >= max(h, w))
    if degenerate:
        # every off-center tap lands in zero padding -> 1x1 conv on center tap
        w_p = cp["wc"]
        kp = w_p.shape[0]
        a = x.reshape(n * h * w, cin).astype(jnp.bfloat16)
        if kp > cin:
            a = jnp.pad(a, ((0, 0), (0, kp - cin)))
        oh, ow = h, w
    else:
        w_p = cp["w"]
        a, oh, ow = _im2col_bf16(x, kh, kw, stride, padding, dilation,
                                 w_p.shape[0])
    r = residual.reshape(n * oh * ow, cout) if residual is not None else None
    y = matmul_fused(a, w_p, cp["sb"], cout=cout, act=act,
                     residual=r, res_mode=res_mode)
    return y.reshape(n, oh, ow, cout)


def maxpool_3x3_s2_p1_ceil(x):
    """nn.MaxPool2d(kernel_size=3, stride=2, padding=1, ceil_mode=True)."""
    n, h, w, c = x.shape

    def out_dim(d):
        o = -(-(d + 2 - 3) // 2) + 1
        if (o - 1) * 2 >= d + 1:
            o -= 1
        return o

    oh, ow = out_dim(h), out_dim(w)
    pr_h = (oh - 1) * 2 + 3 - 1 - h
    pr_w = (ow - 1) * 2 + 3 - 1 - w
    xp = jnp.pad(x, ((0, 0), (1, pr_h), (1, pr_w), (0, 0)),
                 constant_values=-jnp.inf)
    return lax.reduce_window(xp, -jnp.inf, lax.max,
                             (1, 3, 3, 1), (1, 2, 2, 1), "VALID")


def adaptive_avg_pool(x, oh, ow):
    n, h, w, c = x.shape
    rows = []
    for i in range(oh):
        h0, h1 = (i * h) // oh, -(-((i + 1) * h) // oh)
        cols = []
        for j in range(ow):
            w0, w1 = (j * w) // ow, -(-((j + 1) * w) // ow)
            cols.append(jnp.mean(x[:, h0:h1, w0:w1, :], axis=(1, 2)))
        rows.append(jnp.stack(cols, axis=1))
    return jnp.stack(rows, axis=1)


def interp_bilinear_align_corners(x, oh, ow):
    n, h, w, c = x.shape
    ys = jnp.zeros((oh,), jnp.float32) if h == 1 else jnp.linspace(0.0, h - 1.0, oh)
    xs = jnp.zeros((ow,), jnp.float32) if w == 1 else jnp.linspace(0.0, w - 1.0, ow)
    y0 = jnp.floor(ys).astype(jnp.int32); y1 = jnp.minimum(y0 + 1, h - 1); wy = ys - y0
    x0 = jnp.floor(xs).astype(jnp.int32); x1 = jnp.minimum(x0 + 1, w - 1); wx = xs - x0
    wxn = wx[None, None, :, None]
    wyn = wy[None, :, None, None]
    top = x[:, y0][:, :, x0] * (1.0 - wxn) + x[:, y0][:, :, x1] * wxn
    bot = x[:, y1][:, :, x0] * (1.0 - wxn) + x[:, y1][:, :, x1] * wxn
    return top * (1.0 - wyn) + bot * wyn


# ----------------------------------------------------------------------------
# deterministic parameter construction (weights packed/padded ONCE, in bf16)
# ----------------------------------------------------------------------------
class ParamGen:
    def __init__(self, key):
        self.key = key
        self.i = 0

    def _next(self):
        k = jax.random.fold_in(self.key, self.i)
        self.i += 1
        return k

    def conv_w(self, kh, kw, cin, cout):
        # m.weight.data.normal_(0, 0.001), stored in HWIO layout
        return 0.001 * jax.random.normal(self._next(), (kh, kw, cin, cout),
                                         jnp.float32)

    def bn(self, c):
        # gamma ~ N(1, 0.02), beta = 0, running stats (0, 1) -> folded affine
        gamma = 1.0 + 0.02 * jax.random.normal(self._next(), (c,), jnp.float32)
        beta = jnp.zeros((c,), jnp.float32)
        scale = gamma / jnp.sqrt(1.0 + BN_EPS)
        return scale, beta


def _pack_w(w_hwio, scale, bias):
    kh, kw, cin, cout = w_hwio.shape
    k = kh * kw * cin
    kp, _ = _pick_tiles(k, K_CAP, 128)
    np_, _ = _pick_tiles(cout, N_CAP, 128)
    w = jnp.zeros((kp, np_), jnp.bfloat16).at[:k, :cout].set(
        w_hwio.reshape(k, cout).astype(jnp.bfloat16))
    sb = jnp.zeros((2, np_), jnp.float32)
    sb = sb.at[0, :cout].set(scale).at[1, :cout].set(bias)
    return w, sb


def _pack_conv_dict(w_hwio, scale, bias):
    kh, kw, cin, cout = w_hwio.shape
    w, sb = _pack_w(w_hwio, scale, bias)
    return {"w": w, "sb": sb, "kh": kh, "kw": kw, "cin": cin, "cout": cout}


def _make_raw(g, kh, kw, cin, cout, bn=True, conv_bias=False):
    w = g.conv_w(kh, kw, cin, cout)
    if bn:
        scale, beta = g.bn(cout)
    else:
        scale = jnp.ones((cout,), jnp.float32)
        beta = jnp.zeros((cout,), jnp.float32)
    bias = beta
    if conv_bias:
        # TODO(synk): PyTorch's default fan-in-uniform conv bias init not replicated (kept 0).
        bias = jnp.zeros((cout,), jnp.float32) * scale + beta
    return w, scale, bias


def conv_param(g, kh, kw, cin, cout, bn=True, conv_bias=False, center=False):
    w, scale, bias = _make_raw(g, kh, kw, cin, cout, bn, conv_bias)
    cp = _pack_conv_dict(w, scale, bias)
    if center and kh == 3 and kw == 3:
        # center-tap 1x1 pack for the degenerate case dilation >= feature extent
        wc, _ = _pack_w(w[1:2, 1:2], scale, bias)
        cp["wc"] = wc
    return cp


def make_layer(g, inplanes, planes, blocks, stride=1, dilation=1):
    blist = []
    need_ds = (stride != 1 or inplanes[0] != planes * 4
               or dilation == 2 or dilation == 4)
    for b in range(blocks):
        s = stride if b == 0 else 1
        p = {"c1": conv_param(g, 1, 1, inplanes[0], planes),
             "c2": conv_param(g, 3, 3, planes, planes),
             "c3": conv_param(g, 1, 1, planes, planes * 4),
             "stride": s, "dilation": dilation}
        if b == 0 and need_ds:
            p["cd"] = conv_param(g, 1, 1, inplanes[0], planes * 4)
        inplanes[0] = planes * 4
        blist.append(p)
    return blist


def init_params(key):
    g = ParamGen(key)
    P = {}
    P["conv1"] = conv_param(g, 3, 3, 3, 64)
    P["conv2"] = conv_param(g, 3, 3, 64, 64)
    P["conv3"] = conv_param(g, 3, 3, 64, 64)

    inplanes = [64]
    P["layer1"] = make_layer(g, inplanes, 64, LAYERS[0])
    P["layer2"] = make_layer(g, inplanes, 128, LAYERS[1], stride=2)
    if DILATE_SCALE == 8:
        P["layer3"] = make_layer(g, inplanes, 256, LAYERS[2], stride=1, dilation=2)
        P["layer4"] = make_layer(g, inplanes, 512, LAYERS[3], stride=1, dilation=4)
    else:  # dilate_scale == 16 (default)
        P["layer3"] = make_layer(g, inplanes, 256, LAYERS[2], stride=2)
        P["layer4"] = make_layer(g, inplanes, 512, LAYERS[3], stride=1, dilation=2)

    # _ASPPModule_v2(2048, 256, os=8) -> rates = [3, 2, 6, 12, 18]
    aspp = {"gave": conv_param(g, 1, 1, 2048, 128)}
    raw_c = _make_raw(g, 1, 1, 2048, 512)
    raw_a1 = _make_raw(g, 3, 3, 2048, 256)    # dilation 2
    raw_a2 = _make_raw(g, 3, 3, 2048, 128)    # dilation 6
    raw_a3 = _make_raw(g, 3, 3, 2048, 128)    # dilation 12
    raw_a4 = _make_raw(g, 3, 3, 2048, 128)    # dilation 18
    aspp["c1x1"] = _pack_conv_dict(*raw_c)
    aspp["a1"] = _pack_conv_dict(*raw_a1)
    aspp["a2"] = _pack_conv_dict(*raw_a2)
    aspp["a3"] = _pack_conv_dict(*raw_a3)
    aspp["a4"] = _pack_conv_dict(*raw_a4)
    # Degenerate-fused pack: when dilation >= feature extent, aspp_2/3/4 only
    # sample their center tap; conv1x1 + those center taps share the A matrix
    # -> one matmul with N = 512 + 3*128 = 896.
    w_f = jnp.concatenate([raw_c[0], raw_a2[0][1:2, 1:2],
                           raw_a3[0][1:2, 1:2], raw_a4[0][1:2, 1:2]], axis=3)
    s_f = jnp.concatenate([raw_c[1], raw_a2[1], raw_a3[1], raw_a4[1]])
    b_f = jnp.concatenate([raw_c[2], raw_a2[2], raw_a3[2], raw_a4[2]])
    wf, sbf = _pack_w(w_f, s_f, b_f)
    aspp["fused1x1"] = {"w": wf, "sb": sbf,
                        "cout": 512 + 3 * 128, "split": (512, 128, 128, 128)}
    aspp["cat"] = conv_param(g, 1, 1, 5 * 256, 512)
    P["aspp"] = aspp

    # AttentionModule_v5(2048, 512, 512, reduction=1)
    P["attn"] = {
        "down": conv_param(g, 3, 3, 2048, 512, center=True),   # dilation 4
        "ca1": conv_param(g, 3, 3, 1024, 512, bn=False),
        "ca2": conv_param(g, 1, 1, 512, 512, bn=False),
        "psi": conv_param(g, 1, 1, 512, 1, bn=False),
        "fus": conv_param(g, 1, 1, 512, 512),
    }
    # conv_last
    P["cl1"] = conv_param(g, 3, 3, 1024, 512, conv_bias=True)
    P["cl2"] = conv_param(g, 1, 1, 512, NUM_CLASSES, bn=False, conv_bias=True)
    return P


# ----------------------------------------------------------------------------
# forward pass
# ----------------------------------------------------------------------------
def bottleneck_forward(p, x):
    out = conv2d(x, p["c1"], act="relu")
    out = conv2d(out, p["c2"], stride=p["stride"], padding=p["dilation"],
                 dilation=p["dilation"], act="relu")
    if "cd" in p:
        identity = conv2d(x, p["cd"], stride=p["stride"], act=None)
    else:
        identity = x
    # BN3 + residual add + ReLU fused into the matmul epilogue
    return conv2d(out, p["c3"], act="relu",
                  residual=identity, res_mode="add_then_act")


def aspp_forward(p, x):
    n, h, w, c = x.shape
    r0, r1, r2, r3, r4 = ASPP_RATES   # 3, 2, 6, 12, 18
    g = adaptive_avg_pool(x, r0, r0)
    g = conv2d(g, p["gave"], act="relu")
    x1 = interp_bilinear_align_corners(g, h, w)
    a1 = conv2d(x, p["a1"], padding=r1, dilation=r1, act="relu")
    if r2 >= max(h, w):
        # aspp_2/3/4 degenerate to their center tap; fuse with conv1x1 into ONE matmul
        fp = p["fused1x1"]
        a = x.reshape(n * h * w, c).astype(jnp.bfloat16)
        kp = fp["w"].shape[0]
        if kp > c:
            a = jnp.pad(a, ((0, 0), (0, kp - c)))
        y = matmul_fused(a, fp["w"], fp["sb"], cout=fp["cout"], act="relu")
        o0 = fp["split"][0]
        o1 = o0 + fp["split"][1]
        o2 = o1 + fp["split"][2]
        c1 = y[:, :o0].reshape(n, h, w, -1)
        a2 = y[:, o0:o1].reshape(n, h, w, -1)
        a3 = y[:, o1:o2].reshape(n, h, w, -1)
        a4 = y[:, o2:].reshape(n, h, w, -1)
    else:
        c1 = conv2d(x, p["c1x1"], act="relu")
        a2 = conv2d(x, p["a2"], padding=r2, dilation=r2, act="relu")
        a3 = conv2d(x, p["a3"], padding=r3, dilation=r3, act="relu")
        a4 = conv2d(x, p["a4"], padding=r4, dilation=r4, act="relu")
    cat = jnp.concatenate([x1, c1, a1, a2, a3, a4], axis=-1)
    return conv2d(cat, p["cat"], act="relu")


def attention_forward(p, x_low, x_high):
    # downchannels: 3x3 d=4 -> degenerates to the center-tap 1x1 at a 3x3 map
    xl = conv2d(x_low, p["down"], padding=4, dilation=4, act="relu")
    x = jnp.concatenate([xl, x_high], axis=-1)              # (N,H,W,1024)
    ca = adaptive_avg_pool(x, 3, 3)
    ca = conv2d(ca, p["ca1"], act="relu")                    # 3x3 no pad -> (N,1,1,512)
    ca = conv2d(ca, p["ca2"], act="sigmoid")                 # (N,1,1,512)
    sa = conv2d(x_high, p["psi"], act="sigmoid")             # (N,H,W,1)
    # x_f = x_low*channel_attention + x_low*spatial_attention (tiny -> plain XLA)
    x_f = xl * ca + xl * sa
    # fusion conv (1x1+BN+ReLU) then the final residual add: x_low + relu(bn(conv(x_f)))
    return conv2d(x_f, p["fus"], act="relu",
                  residual=xl, res_mode="act_then_add")


def aspnet_v2_forward(P, x_nchw):
    x = jnp.transpose(x_nchw, (0, 2, 3, 1)).astype(jnp.float32)   # -> NHWC
    x = conv2d(x, P["conv1"], stride=2, padding=1, act="relu")
    x = conv2d(x, P["conv2"], padding=1, act="relu")
    x = conv2d(x, P["conv3"], padding=1, act="relu")
    x = maxpool_3x3_s2_p1_ceil(x)
    for name in ("layer1", "layer2", "layer3", "layer4"):
        for blk in P[name]:
            x = bottleneck_forward(blk, x)
    x_low = x                                                # (N,h,w,2048)
    x = aspp_forward(P["aspp"], x)                            # (N,h,w,512)
    x_attention = attention_forward(P["attn"], x_low, x)      # (N,h,w,512)
    x_last = jnp.concatenate([x, x_attention], axis=-1)       # (N,h,w,1024)
    y = conv2d(x_last, P["cl1"], padding=1, act="relu")
    # nn.Dropout2d(0.2): identity in eval semantics
    y = conv2d(y, P["cl2"], act=None)
    return jnp.transpose(y, (0, 3, 1, 2))                     # back to NCHW


# ----------------------------------------------------------------------------
if __name__ == "__main__":
    key = jax.random.PRNGKey(0)
    x_key, p_key = jax.random.split(key)
    x = jax.random.normal(x_key, (2, 3, 32, 32), jnp.float32)   # NCHW input
    params = init_params(p_key)

    out = aspnet_v2_forward(params, x)
    out = jax.block_until_ready(out)

    # input 32x32, dilate_scale=16 -> final stride 16 -> 3x3 feature map
    assert out.shape == (2, NUM_CLASSES, 3, 3), out.shape
    assert bool(jnp.all(jnp.isfinite(out)))
    print("KERNEL_OK")
</pallas_src>

<mosaic_0001>
module attributes {stable_mosaic.version = 11 : i64} {
  func.func @_mm_kernel(%arg0: i32, %arg1: i32, %arg2: i32, %arg3: memref<256x128xbf16, #tpu.memory_space<vmem>>, %arg4: memref<128x128xbf16, #tpu.memory_space<vmem>>, %arg5: memref<2x128xf32, #tpu.memory_space<vmem>>, %arg6: memref<256x128xf32, #tpu.memory_space<vmem>>, %arg7: memref<256x128xf32, #tpu.memory_space<vmem>>) attributes {dimension_semantics = [#tpu.dimension_semantics<parallel>, #tpu.dimension_semantics<parallel>, #tpu.dimension_semantics<arbitrary>], iteration_bounds = array<i64: 2, 1, 1>, scalar_prefetch = 0 : i64, scratch_operands = 1 : i64, tpu.core_type = #tpu.core_type<tc>, window_params = [{transform_indices = @transform_0, window_bounds = array<i64: 256, 128>}, {transform_indices = @transform_1, window_bounds = array<i64: 128, 128>}, {transform_indices = @transform_2, window_bounds = array<i64: 2, 128>}, {transform_indices = @transform_3, window_bounds = array<i64: 256, 128>}]} {
    %c0_i32 = arith.constant 0 : i32
    %0 = arith.cmpi eq, %arg2, %c0_i32 : i32
    %1 = arith.extui %0 : i1 to i32
    %c0_i32_0 = arith.constant 0 : i32
    %2 = arith.cmpi ne, %1, %c0_i32_0 : i32
    scf.if %2 {
      %cst_10 = arith.constant 0.000000e+00 : f32
      %12 = vector.broadcast %cst_10 : f32 to vector<256x128xf32>
      %c0_11 = arith.constant 0 : index
      %c0_12 = arith.constant 0 : index
      %13 = vector.load %arg7[%c0_11, %c0_12] : memref<256x128xf32, #tpu.memory_space<vmem>>, vector<256x128xf32>
      tpu.vector_store %arg7[%c0_11, %c0_12], %12 {strides = array<i32>} : memref<256x128xf32, #tpu.memory_space<vmem>>, vector<256x128xf32>,
    } else {
    }
    %c0 = arith.constant 0 : index
    %c0_1 = arith.constant 0 : index
    %3 = vector.load %arg7[%c0, %c0_1] : memref<256x128xf32, #tpu.memory_space<vmem>>, vector<256x128xf32>
    %c0_2 = arith.constant 0 : index
    %c0_3 = arith.constant 0 : index
    %4 = vector.load %arg3[%c0_2, %c0_3] : memref<256x128xbf16, #tpu.memory_space<vmem>>, vector<256x128xbf16>
    %c0_4 = arith.constant 0 : index
    %c0_5 = arith.constant 0 : index
    %5 = vector.load %arg4[%c0_4, %c0_5] : memref<128x128xbf16, #tpu.memory_space<vmem>>, vector<128x128xbf16>
    %cst = arith.constant dense<0.000000e+00> : vector<256x128xf32>
    %6 = tpu.matmul %4, %5, %cst {dimension_numbers = #tpu.dot_dimension_numbers<[1], [0], [0], [1], [0, 0, 1, 1], [], []>} : vector<256x128xbf16>, vector<128x128xbf16>, vector<256x128xf32> -> vector<256x128xf32>
    %7 = arith.addf %3, %6 : vector<256x128xf32>
    %c0_6 = arith.constant 0 : index
    %c0_7 = arith.constant 0 : index
    %8 = vector.load %arg7[%c0_6, %c0_7] : memref<256x128xf32, #tpu.memory_space<vmem>>, vector<256x128xf32>
    tpu.vector_store %arg7[%c0_6, %c0_7], %7 {strides = array<i32>} : memref<256x128xf32, #tpu.memory_space<vmem>>, vector<256x128xf32>,
    %c0_i32_8 = arith.constant 0 : i32
    %9 = arith.cmpi eq, %arg2, %c0_i32_8 : i32
    %10 = arith.extui %9 : i1 to i32
    %c0_i32_9 = arith.constant 0 : i32
    %11 = arith.cmpi ne, %10, %c0_i32_9 : i32
    scf.if %11 {
      %c0_10 = arith.constant 0 : index
      %c0_11 = arith.constant 0 : index
      %12 = vector.load %arg7[%c0_10, %c0_11] : memref<256x128xf32, #tpu.memory_space<vmem>>, vector<256x128xf32>
      %c0_12 = arith.constant 0 : index
      %c0_13 = arith.constant 0 : index
      %13 = vector.load %arg5[%c0_12, %c0_13] : memref<2x128xf32, #tpu.memory_space<vmem>>, vector<1x128xf32>
      %14 = vector.broadcast %13 : vector<1x128xf32> to vector<256x128xf32>
      %15 = arith.mulf %12, %14 : vector<256x128xf32>
      %c1 = arith.constant 1 : index
      %c0_14 = arith.constant 0 : index
      %16 = vector.load %arg5[%c1, %c0_14] : memref<2x128xf32, #tpu.memory_space<vmem>>, vector<1x128xf32>
      %17 = vector.broadcast %16 : vector<1x128xf32> to vector<256x128xf32>
      %18 = arith.addf %15, %17 : vector<256x128xf32>
      %cst_15 = arith.constant 0.000000e+00 : f32
      %19 = vector.broadcast %cst_15 : f32 to vector<256x128xf32>
      %20 = arith.maximumf %18, %19 : vector<256x128xf32>
      %c0_16 = arith.constant 0 : index
      %c0_17 = arith.constant 0 : index
      %21 = vector.load %arg6[%c0_16, %c0_17] : memref<256x128xf32, #tpu.memory_space<vmem>>, vector<256x128xf32>
      tpu.vector_store %arg6[%c0_16, %c0_17], %20 {strides = array<i32>} : memref<256x128xf32, #tpu.memory_space<vmem>>, vector<256x128xf32>,
    } else {
    }
    return
  }
  func.func @transform_0(%arg0: i32, %arg1: i32, %arg2: i32) -> (i32, i32) {
    %c0_i32 = arith.constant 0 : i32
    return %arg0, %arg2 : i32, i32
  }
  func.func @transform_1(%arg0: i32, %arg1: i32, %arg2: i32) -> (i32, i32) {
    %c0_i32 = arith.constant 0 : i32
    return %arg2, %arg1 : i32, i32
  }
  func.func @transform_2(%arg0: i32, %arg1: i32, %arg2: i32) -> (i32, i32) {
    %c0_i32 = arith.constant 0 : i32
    %c0_i32_0 = arith.constant 0 : i32
    return %c0_i32, %arg1 : i32, i32
  }
  func.func @transform_3(%arg0: i32, %arg1: i32, %arg2: i32) -> (i32, i32) {
    %c0_i32 = arith.constant 0 : i32
    return %arg0, %arg1 : i32, i32
  }
}

</mosaic_0001>

<llo_original>
// kernel: tpu_custom_call.1
$region0: #{tpu_custom_call.1}
  #allocation0 [shape = 'u32[]', space=smem, size = 0x4, offset = 0x4, fixed_abs, tag = 'smem constant byte address 0x4 - core index']
  #allocation1 [shape = 'u32[72,128]{1,0:T(1,128)}', space=vmem, size = 0x9000, scoped, tag = 'internal scratch']
  #allocation2 [shape = 'f32[256,128]{1,0:T(8,128)}', space=vmem, size = 0x20000, scoped, tag = 'scratch operand']
  %s0 = inlined_call_operand.hbm [shape: bf16[512,128], index: 0, kind: input, shape index: {}]
  %s1 = inlined_call_operand.hbm [shape: bf16[128,128], index: 1, kind: input, shape index: {}]
  %s2 = inlined_call_operand.hbm [shape: f32[2,128], index: 2, kind: input, shape index: {}]
  %s3 = inlined_call_operand.hbm [shape: f32[512,128], index: 3, kind: output, shape index: {}]
  %s4 = sld [smem:[#allocation0]]
  $region65: #{tpu_custom_call.1} parent=0
    _
  %s6 = ssub.s32 1, %s4
  %s7 = scalar_select 0, %s6, %s4
  $region1: #{tpu_custom_call.1} parent=0
    #allocation3 [shape = 'u8[131072]{0}', space=vmem, size = 0x20000, scoped, tag = 'input window, operand 0']
    #allocation4 [shape = 's32[2]{0}', space=sflag, size = 0x8, scoped, tag = 'scoped memory for tpu_custom_call.1']
    #allocation5 [shape = 's32[2]{0}', space=sflag, size = 0x8, scoped, tag = 'scoped memory for tpu_custom_call.1']
    #allocation6 [shape = 'u8[32768]{0}', space=vmem, size = 0x8000, scoped, tag = 'input window, operand 1, single buffered']
    #allocation7 [shape = 's32[1]{0}', space=sflag, size = 0x4, scoped, tag = 'scoped memory for tpu_custom_call.1']
    #allocation8 [shape = 'u8[1024]{0}', space=vmem, size = 0x400, scoped, tag = 'input window, operand 2, single buffered']
    #allocation9 [shape = 'u8[262144]{0}', space=vmem, size = 0x40000, scoped, tag = 'output window, operand 0']
    %8 = vsyncpa [#allocation4], 0
    %s9 = scalar_lea.sflag [#allocation4], 1
    %10 = vsyncpa %s9, 0
    %11 = vsyncpa [#allocation7], 0
    %12 = vsyncpa [#allocation5], 0
    %s13 = scalar_lea.sflag [#allocation5], 1
    %14 = vsyncpa %s13, 0
    loop: start=0, step=1, limit=4
    $region2: #{tpu_custom_call.1} parent=1 // loop_pre_header
      _
    $region3: #{tpu_custom_call.1} parent=1 // loop_header
      %s16 = sphi 0, %s20
      %p17 = scmp.ge.s32.totalorder %s16, 4
      %s23 = sphi 0, %s42
      %s24 = sphi 0, %s38
      %s25 = sphi 0, %s34
      %s26 = sphi 0, %s23
      %s27 = sphi 0, %s24
      %s28 = sphi 0, %s25
      %s29 = sphi 0, %s26
      %s30 = sphi 0, %s27
      %s31 = sphi 0, %s28
      %s47 = sphi 0, %s49
      %s50 = sphi 0, %s47
      %s51 = sphi 0, %s50
      %s67 = sphi 0, %s51
      %s75 = sphi 0, %s77
      %s78 = sphi 0, %s75
      %s79 = sphi 0, %s78
      %s95 = sphi 0, %s79
      %s101 = sphi 0, %s103
      %s104 = sphi 0, %s101
      %s105 = sphi 0, %s104
      %s121 = sphi 0, %s105
      %s129 = sphi 0, %s131
      %s132 = sphi 0, %s129
      %s133 = sphi 0, %s132
      %s149 = sphi 0, %s133
    $region4: #{tpu_custom_call.1} parent=1 // loop_header_branch
      %19 = sbr.rel (%p17) target = $region8
    $region5: #{tpu_custom_call.1} parent=1 // loop_body
      %s21 = ssub.s32 %s16, 1
      %s22 = ssub.s32 %s16, 2
      %s32 = sadd.s32 1, %s25
      %p33 = scmp.ge.s32.totalorder %s32, 1
      %s34 = scalar_select %p33, 0, %s32
      %s35 = sadd.s32 1, %s24
      %s36 = scalar_select %p33, %s35, %s24
      %p37 = scmp.ge.s32.totalorder %s36, 1
      %s38 = scalar_select %p37, 0, %s36
      %s39 = sadd.s32 1, %s23
      %s40 = scalar_select %p37, %s39, %s23
      %p41 = scmp.ge.s32.totalorder %s40, 2
      %s42 = scalar_select %p41, 0, %s40
      %s43 = ssub.s32 %s23, %s42
      %s44 = ssub.s32 %s25, %s34
      %s45 = sor.u32 %s43, %s44
      %p46 = scmp.eq.s32.totalorder %s45, 0
      %s48 = sadd.s32 %s47, 1
      %s49 = scalar_select %p46, %s47, %s48
      %p52 = pneg %p46
      %p53 = scmp.eq.s32.totalorder %s16, 1
      %p54 = por %p52, %p53
      %p55 = scmp.ne.s32.totalorder %s47, %s50
      %p56 = scmp.eq.s32.totalorder %s16, 0
      %p57 = por %p55, %p56
      %p58 = scmp.ne.s32.totalorder %s47, %s50
      %p59 = scmp.eq.s32.totalorder %s21, 1
      %p60 = por %p58, %p59
      %p61 = scmp.ne.s32.totalorder %s50, %s51
      %p62 = scmp.eq.s32.totalorder %s21, 0
      %p63 = por %p61, %p62
      %p64 = scmp.ne.s32.totalorder %s50, %s51
      %p65 = scmp.eq.s32.totalorder %s22, 1
      %p66 = por %p64, %p65
      %p68 = scmp.ne.s32.totalorder %s51, %s67
      %p69 = scmp.eq.s32.totalorder %s22, 0
      %p70 = por %p68, %p69
      %s71 = ssub.s32 %s25, %s34
      %s72 = ssub.s32 %s24, %s38
      %s73 = sor.u32 %s71, %s72
      %p74 = scmp.eq.s32.totalorder %s73, 0
      %s76 = sadd.s32 %s75, 1
      %s77 = scalar_select %p74, %s75, %s76
      %p80 = pneg %p74
      %p81 = scmp.eq.s32.totalorder %s16, 1
      %p82 = por %p80, %p81
      %p83 = scmp.ne.s32.totalorder %s75, %s78
      %p84 = scmp.eq.s32.totalorder %s16, 0
      %p85 = por %p83, %p84
      %p86 = scmp.ne.s32.totalorder %s75, %s78
      %p87 = scmp.eq.s32.totalorder %s21, 1
      %p88 = por %p86, %p87
      %p89 = scmp.ne.s32.totalorder %s78, %s79
      %p90 = scmp.eq.s32.totalorder %s21, 0
      %p91 = por %p89, %p90
      %p92 = scmp.ne.s32.totalorder %s78, %s79
      %p93 = scmp.eq.s32.totalorder %s22, 1
      %p94 = por %p92, %p93
      %p96 = scmp.ne.s32.totalorder %s79, %s95
      %p97 = scmp.eq.s32.totalorder %s22, 0
      %p98 = por %p96, %p97
      %s99 = ssub.s32 %s24, %s38
      %p100 = scmp.eq.s32.totalorder %s99, 0
      %s102 = sadd.s32 %s101, 1
      %s103 = scalar_select %p100, %s101, %s102
      %p106 = pneg %p100
      %p107 = scmp.eq.s32.totalorder %s16, 1
      %p108 = por %p106, %p107
      %p109 = scmp.ne.s32.totalorder %s101, %s104
      %p110 = scmp.eq.s32.totalorder %s16, 0
      %p111 = por %p109, %p110
      %p112 = scmp.ne.s32.totalorder %s101, %s104
      %p113 = scmp.eq.s32.totalorder %s21, 1
      %p114 = por %p112, %p113
      %p115 = scmp.ne.s32.totalorder %s104, %s105
      %p116 = scmp.eq.s32.totalorder %s21, 0
      %p117 = por %p115, %p116
      %p118 = scmp.ne.s32.totalorder %s104, %s105
      %p119 = scmp.eq.s32.totalorder %s22, 1
      %p120 = por %p118, %p119
      %p122 = scmp.ne.s32.totalorder %s105, %s121
      %p123 = scmp.eq.s32.totalorder %s22, 0
      %p124 = por %p122, %p123
      %s125 = ssub.s32 %s23, %s42
      %s126 = ssub.s32 %s24, %s38
      %s127 = sor.u32 %s125, %s126
      %p128 = scmp.eq.s32.totalorder %s127, 0
      %s130 = sadd.s32 %s129, 1
      %s131 = scalar_select %p128, %s129, %s130
      %p134 = pneg %p128
      %p135 = scmp.eq.s32.totalorder %s16, 1
      %p136 = por %p134, %p135
      %p137 = scmp.ne.s32.totalorder %s129, %s132
      %p138 = scmp.eq.s32.totalorder %s16, 0
      %p139 = por %p137, %p138
      %p140 = scmp.ne.s32.totalorder %s129, %s132
      %p141 = scmp.eq.s32.totalorder %s21, 1
      %p142 = por %p140, %p141
      %p143 = scmp.ne.s32.totalorder %s132, %s133
      %p144 = scmp.eq.s32.totalorder %s21, 0
      %p145 = por %p143, %p144
      %p146 = scmp.ne.s32.totalorder %s132, %s133
      %p147 = scmp.eq.s32.totalorder %s22, 1
      %p148 = por %p146, %p147
      %p150 = scmp.ne.s32.totalorder %s133, %s149
      %p151 = scmp.eq.s32.totalorder %s22, 0
      %p152 = por %p150, %p151
      %p153 = scmp.le.s32.totalorder 1, %s16
      %p154 = scmp.lt.s32.totalorder %s16, 3
      %p155 = pnand %p153, %p154
      %p156 = pneg %p155
      // Predicated region
      $region9: #{tpu_custom_call.1} parent=5 // pred_check
        _
      $region10: #{tpu_custom_call.1} parent=5 // pred_check_branch
        %158 = sbr.rel (%p155) target = $region12
      $region11: #{tpu_custom_call.1} parent=5 // pred_region
        %s159 = ssub.s32 %s16, 1
        // Predicated region
        $region13: #{tpu_custom_call.1} parent=11 // pred_check
          %p160 = pneg %p91
        $region14: #{tpu_custom_call.1} parent=11 // pred_check_branch
          %162 = sbr.rel (%p160) target = $region16
        $region15: #{tpu_custom_call.1} parent=11 // pred_region
          %s163 = smul.u32 16, %s28
          %165 = vsyncadd [#allocation7], 0
          %s166 = sadd.s32 %s27, %s163
          %s167 = smul.addr %s166, 4
          %s168 = scalar_lea.hbm %s1, %s167
          %s169 = sshll.u32 %s168, 4
          %s170 = int_to_ptr.hbm [resolvable:$true] %s169
          %s171 = sshll.u32 [#allocation6], 4
          %s172 = int_to_ptr.vmem [resolvable:$true] %s171
          %177 = dma.hbm_to_vmem [thread:$0]  %s170, 1024, %s172, [#allocation7], 64, 64, 4
        $region16: #{tpu_custom_call.1} parent=11 // pred_fallthru
          _
        // Predicated region
        $region17: #{tpu_custom_call.1} parent=11 // pred_check
          %p178 = pneg %p117
        $region18: #{tpu_custom_call.1} parent=11 // pred_check_branch
          %180 = sbr.rel (%p178) target = $region20
        $region19: #{tpu_custom_call.1} parent=11 // pred_region
          %182 = vsyncadd [#allocation7], 0
          %s183 = smul.addr %s27, 2
          %s184 = scalar_lea.hbm %s2, %s183
          %s186 = sshll.u32 %s184, 4
          %s187 = int_to_ptr.hbm [resolvable:$true] %s186
          %s188 = sshll.u32 [#allocation8], 4
          %s189 = int_to_ptr.vmem [resolvable:$true] %s188
          %191 = dma.hbm_to_vmem [thread:$0]  %s187, 32, %s189, [#allocation7]
        $region20: #{tpu_custom_call.1} parent=11 // pred_fallthru
          _
      $region12: #{tpu_custom_call.1} parent=5 // pred_fallthru
        _
      %p192 = scmp.lt.s32.totalorder %s16, 2
      // Predicated region
      $region21: #{tpu_custom_call.1} parent=5 // pred_check
        %p193 = pneg %p192
      $region22: #{tpu_custom_call.1} parent=5 // pred_check_branch
        %195 = sbr.rel (%p193) target = $region24
      $region23: #{tpu_custom_call.1} parent=5 // pred_region
        // Predicated region
        $region25: #{tpu_custom_call.1} parent=23 // pred_check
          %p196 = pneg %p57
        $region26: #{tpu_custom_call.1} parent=23 // pred_check_branch
          %198 = sbr.rel (%p196) target = $region28
        $region27: #{tpu_custom_call.1} parent=23 // pred_region
          %s199 = sand.u32 %s47, 1
          %s200 = scalar_lea.sflag [#allocation4], %s199
          %s201 = sand.u32 %s47, 1
          %s202 = smul.addr %s201, 128
          %s203 = scalar_lea.vmem [#allocation3], %s202
          %s204 = smul.u32 32, %s23
          %206 = vsyncadd %s200, 0
          %s207 = sadd.s32 %s25, %s204
          %s208 = smul.addr %s207, 4
          %s209 = scalar_lea.hbm %s0, %s208
          %s210 = sshll.u32 %s209, 4
          %s211 = int_to_ptr.hbm [resolvable:$true] %s210
          %s212 = sshll.u32 %s203, 4
          %s213 = int_to_ptr.vmem [resolvable:$true] %s212
          %218 = dma.hbm_to_vmem [thread:$0]  %s211, 2048, %s213, %s200, 64, 64, 4
        $region28: #{tpu_custom_call.1} parent=23 // pred_fallthru
          _
      $region24: #{tpu_custom_call.1} parent=5 // pred_fallthru
        _
      %p219 = scmp.le.s32.totalorder 1, %s16
      %p220 = scmp.lt.s32.totalorder %s16, 3
      %p221 = pnand %p219, %p220
      %p222 = pneg %p221
      // Predicated region
      $region29: #{tpu_custom_call.1} parent=5 // pred_check
        _
      $region30: #{tpu_custom_call.1} parent=5 // pred_check_branch
        %224 = sbr.rel (%p221) target = $region32
      $region31: #{tpu_custom_call.1} parent=5 // pred_region
        %s225 = ssub.s32 %s16, 1
        %s226 = sand.u32 %s50, 1
        %s227 = scalar_lea.sflag [#allocation4], %s226
        %s228 = sand.u32 %s50, 1
        %s229 = smul.addr %s228, 128
        %s230 = scalar_lea.vmem [#allocation3], %s229
        // Predicated region
        $region33: #{tpu_custom_call.1} parent=31 // pred_check
          %p231 = pneg %p63
        $region34: #{tpu_custom_call.1} parent=31 // pred_check_branch
          %233 = sbr.rel (%p231) target = $region36
        $region35: #{tpu_custom_call.1} parent=31 // pred_region
          %235 = dma.done %s227, 2048
        $region36: #{tpu_custom_call.1} parent=31 // pred_fallthru
          _
        // Predicated region
        $region37: #{tpu_custom_call.1} parent=31 // pred_check
          %p236 = pneg %p91
        $region38: #{tpu_custom_call.1} parent=31 // pred_check_branch
          %238 = sbr.rel (%p236) target = $region40
        $region39: #{tpu_custom_call.1} parent=31 // pred_region
          %240 = dma.done [#allocation7], 1024
        $region40: #{tpu_custom_call.1} parent=31 // pred_fallthru
          _
        // Predicated region
        $region41: #{tpu_custom_call.1} parent=31 // pred_check
          %p241 = pneg %p117
        $region42: #{tpu_custom_call.1} parent=31 // pred_check_branch
          %243 = sbr.rel (%p241) target = $region44
        $region43: #{tpu_custom_call.1} parent=31 // pred_region
          %245 = dma.done [#allocation7], 32
        $region44: #{tpu_custom_call.1} parent=31 // pred_fallthru
          _
        %s246 = sand.u32 %s50, 1
        %s247 = scalar_lea.sflag [#allocation4], %s246
        %s248 = sand.u32 %s50, 1
        %s249 = smul.addr %s248, 128
        %s250 = scalar_lea.vmem [#allocation3], %s249
        %p251 = pneg %p63
        %p252 = pneg %p60
        %p253 = pneg %p91
        %p254 = pneg %p88
        %p255 = pneg %p117
        %p256 = pneg %p114
        %p257 = pneg %p145
        %p258 = pneg %p142
        %s259 = sand.u32 %s132, 1
        %s260 = scalar_lea.sflag [#allocation5], %s259
        %s261 = sand.u32 %s132, 1
        %s262 = smul.addr %s261, 256
        %s263 = scalar_lea.vmem [#allocation9], %s262
        %s264 = smul.u32 32, %s26
        %s265 = smul.u32 16, %s28
        %s266 = smul.u32 32, %s26
        %p267 = scmp.eq.s32.totalorder %s28, 0
        // Predicated region
        $region45: #{tpu_custom_call.1} parent=31 // pred_check
          %p268 = pneg %p267
        $region46: #{tpu_custom_call.1} parent=31 // pred_check_branch
          %270 = sbr.rel (%p268) target = $region48
        $region47: #{tpu_custom_call.1} parent=31 // pred_region
          %271 = vst [vmem:[#allocation2] sm:$0xff] 0.0
          %272 = vst [vmem:[#allocation2 + $0x8] sm:$0xff] 0.0
          %273 = vst [vmem:[#allocation2 + $0x10] sm:$0xff] 0.0
          %274 = vst [vmem:[#allocation2 + $0x18] sm:$0xff] 0.0
          %275 = vst [vmem:[#allocation2 + $0x20] sm:$0xff] 0.0
          %276 = vst [vmem:[#allocation2 + $0x28] sm:$0xff] 0.0
          %277 = vst [vmem:[#allocation2 + $0x30] sm:$0xff] 0.0
          %278 = vst [vmem:[#allocation2 + $0x38] sm:$0xff] 0.0
          %279 = vst [vmem:[#allocation2 + $0x40] sm:$0xff] 0.0
          %280 = vst [vmem:[#allocation2 + $0x48] sm:$0xff] 0.0
          %281 = vst [vmem:[#allocation2 + $0x50] sm:$0xff] 0.0
          %282 = vst [vmem:[#allocation2 + $0x58] sm:$0xff] 0.0
          %283 = vst [vmem:[#allocation2 + $0x60] sm:$0xff] 0.0
          %284 = vst [vmem:[#allocation2 + $0x68] sm:$0xff] 0.0
          %285 = vst [vmem:[#allocation2 + $0x70] sm:$0xff] 0.0
          %286 = vst [vmem:[#allocation2 + $0x78] sm:$0xff] 0.0
          %287 = vst [vmem:[#allocation2 + $0x80] sm:$0xff] 0.0
          %288 = vst [vmem:[#allocation2 + $0x88] sm:$0xff] 0.0
          %289 = vst [vmem:[#allocation2 + $0x90] sm:$0xff] 0.0
          %290 = vst [vmem:[#allocation2 + $0x98] sm:$0xff] 0.0
          %291 = vst [vmem:[#allocation2 + $0xa0] sm:$0xff] 0.0
          %292 = vst [vmem:[#allocation2 + $0xa8] sm:$0xff] 0.0
          %293 = vst [vmem:[#allocation2 + $0xb0] sm:$0xff] 0.0
          %294 = vst [vmem:[#allocation2 + $0xb8] sm:$0xff] 0.0
          %295 = vst [vmem:[#allocation2 + $0xc0] sm:$0xff] 0.0
          %296 = vst [vmem:[#allocation2 + $0xc8] sm:$0xff] 0.0
          %297 = vst [vmem:[#allocation2 + $0xd0] sm:$0xff] 0.0
          %298 = vst [vmem:[#allocation2 + $0xd8] sm:$0xff] 0.0
          %299 = vst [vmem:[#allocation2 + $0xe0] sm:$0xff] 0.0
          %300 = vst [vmem:[#allocation2 + $0xe8] sm:$0xff] 0.0
          %301 = vst [vmem:[#allocation2 + $0xf0] sm:$0xff] 0.0
          %302 = vst [vmem:[#allocation2 + $0xf8] sm:$0xff] 0.0
        $region48: #{tpu_custom_call.1} parent=31 // pred_fallthru
          _
        %v303 = vld [vmem:[#allocation2] sm:$0xff]
        %v304 = vld [vmem:[#allocation2 + $0x8] sm:$0xff]
        %v305 = vld [vmem:[#allocation2 + $0x10] sm:$0xff]
        %v306 = vld [vmem:[#allocation2 + $0x18] sm:$0xff]
        %v307 = vld [vmem:[#allocation2 + $0x20] sm:$0xff]
        %v308 = vld [vmem:[#allocation2 + $0x28] sm:$0xff]
        %v309 = vld [vmem:[#allocation2 + $0x30] sm:$0xff]
        %v310 = vld [vmem:[#allocation2 + $0x38] sm:$0xff]
        %v311 = vld [vmem:[#allocation2 + $0x40] sm:$0xff]
        %v312 = vld [vmem:[#allocation2 + $0x48] sm:$0xff]
        %v313 = vld [vmem:[#allocation2 + $0x50] sm:$0xff]
        %v314 = vld [vmem:[#allocation2 + $0x58] sm:$0xff]
        %v315 = vld [vmem:[#allocation2 + $0x60] sm:$0xff]
        %v316 = vld [vmem:[#allocation2 + $0x68] sm:$0xff]
        %v317 = vld [vmem:[#allocation2 + $0x70] sm:$0xff]
        %v318 = vld [vmem:[#allocation2 + $0x78] sm:$0xff]
        %v319 = vld [vmem:[#allocation2 + $0x80] sm:$0xff]
        %v320 = vld [vmem:[#allocation2 + $0x88] sm:$0xff]
        %v321 = vld [vmem:[#allocation2 + $0x90] sm:$0xff]
        %v322 = vld [vmem:[#allocation2 + $0x98] sm:$0xff]
        %v323 = vld [vmem:[#allocation2 + $0xa0] sm:$0xff]
        %v324 = vld [vmem:[#allocation2 + $0xa8] sm:$0xff]
        %v325 = vld [vmem:[#allocation2 + $0xb0] sm:$0xff]
        %v326 = vld [vmem:[#allocation2 + $0xb8] sm:$0xff]
        %v327 = vld [vmem:[#allocation2 + $0xc0] sm:$0xff]
        %v328 = vld [vmem:[#allocation2 + $0xc8] sm:$0xff]
        %v329 = vld [vmem:[#allocation2 + $0xd0] sm:$0xff]
        %v330 = vld [vmem:[#allocation2 + $0xd8] sm:$0xff]
        %v331 = vld [vmem:[#allocation2 + $0xe0] sm:$0xff]
        %v332 = vld [vmem:[#allocation2 + $0xe8] sm:$0xff]
        %v333 = vld [vmem:[#allocation2 + $0xf0] sm:$0xff]
        %v334 = vld [vmem:[#allocation2 + $0xf8] sm:$0xff]
        %v335 = vld [vmem:[%s230] sm:$0xf]
        %v336 = vld [vmem:[%s230 + $0x4] sm:$0xf]
        %v337 = vld [vmem:[%s230 + $0x8] sm:$0xf]
        %v338 = vld [vmem:[%s230 + $0xc] sm:$0xf]
        %v339 = vld [vmem:[%s230 + $0x10] sm:$0xf]
        %v340 = vld [vmem:[%s230 + $0x14] sm:$0xf]
        %v341 = vld [vmem:[%s230 + $0x18] sm:$0xf]
        %v342 = vld [vmem:[%s230 + $0x1c] sm:$0xf]
        %v343 = vld [vmem:[%s230 + $0x20] sm:$0xf]
        %v344 = vld [vmem:[%s230 + $0x24] sm:$0xf]
        %v345 = vld [vmem:[%s230 + $0x28] sm:$0xf]
        %v346 = vld [vmem:[%s230 + $0x2c] sm:$0xf]
        %v347 = vld [vmem:[%s230 + $0x30] sm:$0xf]
        %v348 = vld [vmem:[%s230 + $0x34] sm:$0xf]
        %v349 = vld [vmem:[%s230 + $0x38] sm:$0xf]
        %v350 = vld [vmem:[%s230 + $0x3c] sm:$0xf]
        %v351 = vld [vmem:[%s230 + $0x40] sm:$0xf]
        %v352 = vld [vmem:[%s230 + $0x44] sm:$0xf]
        %v353 = vld [vmem:[%s230 + $0x48] sm:$0xf]
        %v354 = vld [vmem:[%s230 + $0x4c] sm:$0xf]
        %v355 = vld [vmem:[%s230 + $0x50] sm:$0xf]
        %v356 = vld [vmem:[%s230 + $0x54] sm:$0xf]
        %v357 = vld [vmem:[%s230 + $0x58] sm:$0xf]
        %v358 = vld [vmem:[%s230 + $0x5c] sm:$0xf]
        %v359 = vld [vmem:[%s230 + $0x60] sm:$0xf]
        %v360 = vld [vmem:[%s230 + $0x64] sm:$0xf]
        %v361 = vld [vmem:[%s230 + $0x68] sm:$0xf]
        %v362 = vld [vmem:[%s230 + $0x6c] sm:$0xf]
        %v363 = vld [vmem:[%s230 + $0x70] sm:$0xf]
        %v364 = vld [vmem:[%s230 + $0x74] sm:$0xf]
        %v365 = vld [vmem:[%s230 + $0x78] sm:$0xf]
        %v366 = vld [vmem:[%s230 + $0x7c] sm:$0xf]
        %v367 = vld [vmem:[#allocation6] sm:$0xf]
        %v368 = vld [vmem:[#allocation6 + $0x4] sm:$0xf]
        %v369 = vld [vmem:[#allocation6 + $0x8] sm:$0xf]
        %v370 = vld [vmem:[#allocation6 + $0xc] sm:$0xf]
        %v371 = vld [vmem:[#allocation6 + $0x10] sm:$0xf]
        %v372 = vld [vmem:[#allocation6 + $0x14] sm:$0xf]
        %v373 = vld [vmem:[#allocation6 + $0x18] sm:$0xf]
        %v374 = vld [vmem:[#allocation6 + $0x1c] sm:$0xf]
        %v375 = vld [vmem:[#allocation6 + $0x20] sm:$0xf]
        %v376 = vld [vmem:[#allocation6 + $0x24] sm:$0xf]
        %v377 = vld [vmem:[#allocation6 + $0x28] sm:$0xf]
        %v378 = vld [vmem:[#allocation6 + $0x2c] sm:$0xf]
        %v379 = vld [vmem:[#allocation6 + $0x30] sm:$0xf]
        %v380 = vld [vmem:[#allocation6 + $0x34] sm:$0xf]
        %v381 = vld [vmem:[#allocation6 + $0x38] sm:$0xf]
        %v382 = vld [vmem:[#allocation6 + $0x3c] sm:$0xf]
        %v415 = vunpack.c.l.b16 %v335
        %v416 = vunpack.c.l.b16 %v336
        %v417 = vunpack.c.l.b16 %v337
        %v418 = vunpack.c.l.b16 %v338
        %v419 = vunpack.c.l.b16 %v339
        %v420 = vunpack.c.l.b16 %v340
        %v421 = vunpack.c.l.b16 %v341
        %v422 = vunpack.c.l.b16 %v342
        %v423 = vunpack.c.l.b16 %v343
        %v424 = vunpack.c.l.b16 %v344
        %v425 = vunpack.c.l.b16 %v345
        %v426 = vunpack.c.l.b16 %v346
        %v427 = vunpack.c.l.b16 %v347
        %v428 = vunpack.c.l.b16 %v348
        %v429 = vunpack.c.l.b16 %v349
        %v430 = vunpack.c.l.b16 %v350
        %v431 = vunpack.c.l.b16 %v351
        %v432 = vunpack.c.l.b16 %v352
        %v433 = vunpack.c.l.b16 %v353
        %v434 = vunpack.c.l.b16 %v354
        %v435 = vunpack.c.l.b16 %v355
        %v436 = vunpack.c.l.b16 %v356
        %v437 = vunpack.c.l.b16 %v357
        %v438 = vunpack.c.l.b16 %v358
        %v439 = vunpack.c.l.b16 %v359
        %v440 = vunpack.c.l.b16 %v360
        %v441 = vunpack.c.l.b16 %v361
        %v442 = vunpack.c.l.b16 %v362
        %v443 = vunpack.c.l.b16 %v363
        %v444 = vunpack.c.l.b16 %v364
        %v445 = vunpack.c.l.b16 %v365
        %v446 = vunpack.c.l.b16 %v366
        %v447 = vpack.c.b16 %v416, %v415
        %v448 = vpack.c.b16 %v418, %v417
        %v449 = vpack.c.b16 %v420, %v419
        %v450 = vpack.c.b16 %v422, %v421
        %v451 = vpack.c.b16 %v424, %v423
        %v452 = vpack.c.b16 %v426, %v425
        %v453 = vpack.c.b16 %v428, %v427
        %v454 = vpack.c.b16 %v430, %v429
        %v455 = vpack.c.b16 %v432, %v431
        %v456 = vpack.c.b16 %v434, %v433
        %v457 = vpack.c.b16 %v436, %v435
        %v458 = vpack.c.b16 %v438, %v437
        %v459 = vpack.c.b16 %v440, %v439
        %v460 = vpack.c.b16 %v442, %v441
        %v461 = vpack.c.b16 %v444, %v443
        %v462 = vpack.c.b16 %v446, %v445
        %v495 = vunpack.c.l.b16 %v367
        %v496 = vunpack.c.l.b16 %v368
        %v497 = vunpack.c.l.b16 %v369
        %v498 = vunpack.c.l.b16 %v370
        %v499 = vunpack.c.l.b16 %v371
        %v500 = vunpack.c.l.b16 %v372
        %v501 = vunpack.c.l.b16 %v373
        %v502 = vunpack.c.l.b16 %v374
        %v503 = vunpack.c.l.b16 %v375
        %v504 = vunpack.c.l.b16 %v376
        %v505 = vunpack.c.l.b16 %v377
        %v506 = vunpack.c.l.b16 %v378
        %v507 = vunpack.c.l.b16 %v379
        %v508 = vunpack.c.l.b16 %v380
        %v509 = vunpack.c.l.b16 %v381
        %v510 = vunpack.c.l.b16 %v382
        %v511 = vpack.c.b16 %v496, %v495
        %v512 = vpack.c.b16 %v498, %v497
        %v513 = vpack.c.b16 %v500, %v499
        %v514 = vpack.c.b16 %v502, %v501
        %v515 = vpack.c.b16 %v504, %v503
        %v516 = vpack.c.b16 %v506, %v505
        %v517 = vpack.c.b16 %v508, %v507
        %v518 = vpack.c.b16 %v510, %v509
        %527 = vmatpush.bf16.msra.mxu0 %v518
        %528 = vmatpush.bf16.msra.mxu0 %v517
        %529 = vmatpush.bf16.msra.mxu0 %v516
        %530 = vmatpush.bf16.msra.mxu0 %v515
        %531 = vmatpush.bf16.msra.mxu0 %v514
        %532 = vmatpush.bf16.msra.mxu0 %v513
        %533 = vmatpush.bf16.msra.mxu0 %v512
        %534 = vmatpush.bf16.msra.mxu0 %v511
        %535 = vmatmul.bf16.gmra.mxu0 %v447
        %v536 = vpop.f32.mrf.mxu0
        %v537 = vadd.f32 0.0, %v536
        %v538 = vpop.f32.mrf.mxu0
        %v539 = vadd.f32 0.0, %v538
        %540 = vmatmul.bf16.gmra.mxu0 %v448
        %v541 = vpop.f32.mrf.mxu0
        %v542 = vadd.f32 0.0, %v541
        %v543 = vpop.f32.mrf.mxu0
        %v544 = vadd.f32 0.0, %v543
        %545 = vmatmul.bf16.gmra.mxu0 %v449
        %v546 = vpop.f32.mrf.mxu0
        %v547 = vadd.f32 0.0, %v546
        %v548 = vpop.f32.mrf.mxu0
        %v549 = vadd.f32 0.0, %v548
        %550 = vmatmul.bf16.gmra.mxu0 %v450
        %v551 = vpop.f32.mrf.mxu0
        %v552 = vadd.f32 0.0, %v551
        %v553 = vpop.f32.mrf.mxu0
        %v554 = vadd.f32 0.0, %v553
        %555 = vmatmul.bf16.gmra.mxu0 %v451
        %v556 = vpop.f32.mrf.mxu0
        %v557 = vadd.f32 0.0, %v556
        %v558 = vpop.f32.mrf.mxu0
        %v559 = vadd.f32 0.0, %v558
        %560 = vmatmul.bf16.gmra.mxu0 %v452
        %v561 = vpop.f32.mrf.mxu0
        %v562 = vadd.f32 0.0, %v561
        %v563 = vpop.f32.mrf.mxu0
        %v564 = vadd.f32 0.0, %v563
        %565 = vmatmul.bf16.gmra.mxu0 %v453
        %v566 = vpop.f32.mrf.mxu0
        %v567 = vadd.f32 0.0, %v566
        %v568 = vpop.f32.mrf.mxu0
        %v569 = vadd.f32 0.0, %v568
        %570 = vmatmul.bf16.gmra.mxu0 %v454
        %v571 = vpop.f32.mrf.mxu0
        %v572 = vadd.f32 0.0, %v571
        %v573 = vpop.f32.mrf.mxu0
        %v574 = vadd.f32 0.0, %v573
        %575 = vmatmul.bf16.gmra.mxu0 %v455
        %v576 = vpop.f32.mrf.mxu0
        %v577 = vadd.f32 0.0, %v576
        %v578 = vpop.f32.mrf.mxu0
        %v579 = vadd.f32 0.0, %v578
        %580 = vmatmul.bf16.gmra.mxu0 %v456
        %v581 = vpop.f32.mrf.mxu0
        %v582 = vadd.f32 0.0, %v581
        %v583 = vpop.f32.mrf.mxu0
        %v584 = vadd.f32 0.0, %v583
        %585 = vmatmul.bf16.gmra.mxu0 %v457
        %v586 = vpop.f32.mrf.mxu0
        %v587 = vadd.f32 0.0, %v586
        %v588 = vpop.f32.mrf.mxu0
        %v589 = vadd.f32 0.0, %v588
        %590 = vmatmul.bf16.gmra.mxu0 %v458
        %v591 = vpop.f32.mrf.mxu0
        %v592 = vadd.f32 0.0, %v591
        %v593 = vpop.f32.mrf.mxu0
        %v594 = vadd.f32 0.0, %v593
        %595 = vmatmul.bf16.gmra.mxu0 %v459
        %v596 = vpop.f32.mrf.mxu0
        %v597 = vadd.f32 0.0, %v596
        %v598 = vpop.f32.mrf.mxu0
        %v599 = vadd.f32 0.0, %v598
        %600 = vmatmul.bf16.gmra.mxu0 %v460
        %v601 = vpop.f32.mrf.mxu0
        %v602 = vadd.f32 0.0, %v601
        %v603 = vpop.f32.mrf.mxu0
        %v604 = vadd.f32 0.0, %v603
        %605 = vmatmul.bf16.gmra.mxu0 %v461
        %v606 = vpop.f32.mrf.mxu0
        %v607 = vadd.f32 0.0, %v606
        %v608 = vpop.f32.mrf.mxu0
        %v609 = vadd.f32 0.0, %v608
        %610 = vmatmul.bf16.gmra.mxu0 %v462
        %v611 = vpop.f32.mrf.mxu0
        %v612 = vadd.f32 0.0, %v611
        %v613 = vpop.f32.mrf.mxu0
        %v614 = vadd.f32 0.0, %v613
        %615 = vdwg.mxu0
        %v616 = vadd.f32 %v303, %v537
        %v617 = vadd.f32 %v304, %v539
        %v618 = vadd.f32 %v305, %v542
        %v619 = vadd.f32 %v306, %v544
        %v620 = vadd.f32 %v307, %v547
        %v621 = vadd.f32 %v308, %v549
        %v622 = vadd.f32 %v309, %v552
        %v623 = vadd.f32 %v310, %v554
        %v624 = vadd.f32 %v311, %v557
        %v625 = vadd.f32 %v312, %v559
        %v626 = vadd.f32 %v313, %v562
        %v627 = vadd.f32 %v314, %v564
        %v628 = vadd.f32 %v315, %v567
        %v629 = vadd.f32 %v316, %v569
        %v630 = vadd.f32 %v317, %v572
        %v631 = vadd.f32 %v318, %v574
        %v632 = vadd.f32 %v319, %v577
        %v633 = vadd.f32 %v320, %v579
        %v634 = vadd.f32 %v321, %v582
        %v635 = vadd.f32 %v322, %v584
        %v636 = vadd.f32 %v323, %v587
        %v637 = vadd.f32 %v324, %v589
        %v638 = vadd.f32 %v325, %v592
        %v639 = vadd.f32 %v326, %v594
        %v640 = vadd.f32 %v327, %v597
        %v641 = vadd.f32 %v328, %v599
        %v642 = vadd.f32 %v329, %v602
        %v643 = vadd.f32 %v330, %v604
        %v644 = vadd.f32 %v331, %v607
        %v645 = vadd.f32 %v332, %v609
        %v646 = vadd.f32 %v333, %v612
        %v647 = vadd.f32 %v334, %v614
        %648 = vst [vmem:[#allocation2] sm:$0xff] %v616
        %649 = vst [vmem:[#allocation2 + $0x8] sm:$0xff] %v617
        %650 = vst [vmem:[#allocation2 + $0x10] sm:$0xff] %v618
        %651 = vst [vmem:[#allocation2 + $0x18] sm:$0xff] %v619
        %652 = vst [vmem:[#allocation2 + $0x20] sm:$0xff] %v620
        %653 = vst [vmem:[#allocation2 + $0x28] sm:$0xff] %v621
        %654 = vst [vmem:[#allocation2 + $0x30] sm:$0xff] %v622
        %655 = vst [vmem:[#allocation2 + $0x38] sm:$0xff] %v623
        %656 = vst [vmem:[#allocation2 + $0x40] sm:$0xff] %v624
        %657 = vst [vmem:[#allocation2 + $0x48] sm:$0xff] %v625
        %658 = vst [vmem:[#allocation2 + $0x50] sm:$0xff] %v626
        %659 = vst [vmem:[#allocation2 + $0x58] sm:$0xff] %v627
        %660 = vst [vmem:[#allocation2 + $0x60] sm:$0xff] %v628
        %661 = vst [vmem:[#allocation2 + $0x68] sm:$0xff] %v629
        %662 = vst [vmem:[#allocation2 + $0x70] sm:$0xff] %v630
        %663 = vst [vmem:[#allocation2 + $0x78] sm:$0xff] %v631
        %664 = vst [vmem:[#allocation2 + $0x80] sm:$0xff] %v632
        %665 = vst [vmem:[#allocation2 + $0x88] sm:$0xff] %v633
        %666 = vst [vmem:[#allocation2 + $0x90] sm:$0xff] %v634
        %667 = vst [vmem:[#allocation2 + $0x98] sm:$0xff] %v635
        %668 = vst [vmem:[#allocation2 + $0xa0] sm:$0xff] %v636
        %669 = vst [vmem:[#allocation2 + $0xa8] sm:$0xff] %v637
        %670 = vst [vmem:[#allocation2 + $0xb0] sm:$0xff] %v638
        %671 = vst [vmem:[#allocation2 + $0xb8] sm:$0xff] %v639
        %672 = vst [vmem:[#allocation2 + $0xc0] sm:$0xff] %v640
        %673 = vst [vmem:[#allocation2 + $0xc8] sm:$0xff] %v641
        %674 = vst [vmem:[#allocation2 + $0xd0] sm:$0xff] %v642
        %675 = vst [vmem:[#allocation2 + $0xd8] sm:$0xff] %v643
        %676 = vst [vmem:[#allocation2 + $0xe0] sm:$0xff] %v644
        %677 = vst [vmem:[#allocation2 + $0xe8] sm:$0xff] %v645
        %678 = vst [vmem:[#allocation2 + $0xf0] sm:$0xff] %v646
        %679 = vst [vmem:[#allocation2 + $0xf8] sm:$0xff] %v647
        // Predicated region
        $region49: #{tpu_custom_call.1} parent=31 // pred_check
          %p680 = pneg %p267
        $region50: #{tpu_custom_call.1} parent=31 // pred_check_branch
          %682 = sbr.rel (%p680) target = $region52
        $region51: #{tpu_custom_call.1} parent=31 // pred_region
          %v683 = vld [vmem:[#allocation2] sm:$0xff]
          %v684 = vld [vmem:[#allocation2 + $0x8] sm:$0xff]
          %v685 = vld [vmem:[#allocation2 + $0x10] sm:$0xff]
          %v686 = vld [vmem:[#allocation2 + $0x18] sm:$0xff]
          %v687 = vld [vmem:[#allocation2 + $0x20] sm:$0xff]
          %v688 = vld [vmem:[#allocation2 + $0x28] sm:$0xff]
          %v689 = vld [vmem:[#allocation2 + $0x30] sm:$0xff]
          %v690 = vld [vmem:[#allocation2 + $0x38] sm:$0xff]
          %v691 = vld [vmem:[#allocation2 + $0x40] sm:$0xff]
          %v692 = vld [vmem:[#allocation2 + $0x48] sm:$0xff]
          %v693 = vld [vmem:[#allocation2 + $0x50] sm:$0xff]
          %v694 = vld [vmem:[#allocation2 + $0x58] sm:$0xff]
          %v695 = vld [vmem:[#allocation2 + $0x60] sm:$0xff]
          %v696 = vld [vmem:[#allocation2 + $0x68] sm:$0xff]
          %v697 = vld [vmem:[#allocation2 + $0x70] sm:$0xff]
          %v698 = vld [vmem:[#allocation2 + $0x78] sm:$0xff]
          %v699 = vld [vmem:[#allocation2 + $0x80] sm:$0xff]
          %v700 = vld [vmem:[#allocation2 + $0x88] sm:$0xff]
          %v701 = vld [vmem:[#allocation2 + $0x90] sm:$0xff]
          %v702 = vld [vmem:[#allocation2 + $0x98] sm:$0xff]
          %v703 = vld [vmem:[#allocation2 + $0xa0] sm:$0xff]
          %v704 = vld [vmem:[#allocation2 + $0xa8] sm:$0xff]
          %v705 = vld [vmem:[#allocation2 + $0xb0] sm:$0xff]
          %v706 = vld [vmem:[#allocation2 + $0xb8] sm:$0xff]
          %v707 = vld [vmem:[#allocation2 + $0xc0] sm:$0xff]
          %v708 = vld [vmem:[#allocation2 + $0xc8] sm:$0xff]
          %v709 = vld [vmem:[#allocation2 + $0xd0] sm:$0xff]
          %v710 = vld [vmem:[#allocation2 + $0xd8] sm:$0xff]
          %v711 = vld [vmem:[#allocation2 + $0xe0] sm:$0xff]
          %v712 = vld [vmem:[#allocation2 + $0xe8] sm:$0xff]
          %v713 = vld [vmem:[#allocation2 + $0xf0] sm:$0xff]
          %v714 = vld [vmem:[#allocation2 + $0xf8] sm:$0xff]
          %v715 = vld [vmem:[#allocation8] sm:$0x1]
          %v716 = vperm.slane %v715, 0
          %v717 = vmul.f32 %v683, %v716
          %v718 = vmul.f32 %v684, %v716
          %v719 = vmul.f32 %v685, %v716
          %v720 = vmul.f32 %v686, %v716
          %v721 = vmul.f32 %v687, %v716
          %v722 = vmul.f32 %v688, %v716
          %v723 = vmul.f32 %v689, %v716
          %v724 = vmul.f32 %v690, %v716
          %v725 = vmul.f32 %v691, %v716
          %v726 = vmul.f32 %v692, %v716
          %v727 = vmul.f32 %v693, %v716
          %v728 = vmul.f32 %v694, %v716
          %v729 = vmul.f32 %v695, %v716
          %v730 = vmul.f32 %v696, %v716
          %v731 = vmul.f32 %v697, %v716
          %v732 = vmul.f32 %v698, %v716
          %v733 = vmul.f32 %v699, %v716
          %v734 = vmul.f32 %v700, %v716
          %v735 = vmul.f32 %v701, %v716
          %v736 = vmul.f32 %v702, %v716
          %v737 = vmul.f32 %v703, %v716
          %v738 = vmul.f32 %v704, %v716
          %v739 = vmul.f32 %v705, %v716
          %v740 = vmul.f32 %v706, %v716
          %v741 = vmul.f32 %v707, %v716
          %v742 = vmul.f32 %v708, %v716
          %v743 = vmul.f32 %v709, %v716
          %v744 = vmul.f32 %v710, %v716
          %v745 = vmul.f32 %v711, %v716
          %v746 = vmul.f32 %v712, %v716
          %v747 = vmul.f32 %v713, %v716
          %v748 = vmul.f32 %v714, %v716
          %v749 = vld [vmem:[#allocation8 + $0x1] sm:$0x1]
          %v750 = vperm.slane %v749, 0
          %v751 = vadd.f32 %v717, %v750
          %v752 = vadd.f32 %v718, %v750
          %v753 = vadd.f32 %v719, %v750
          %v754 = vadd.f32 %v720, %v750
          %v755 = vadd.f32 %v721, %v750
          %v756 = vadd.f32 %v722, %v750
          %v757 = vadd.f32 %v723, %v750
          %v758 = vadd.f32 %v724, %v750
          %v759 = vadd.f32 %v725, %v750
          %v760 = vadd.f32 %v726, %v750
          %v761 = vadd.f32 %v727, %v750
          %v762 = vadd.f32 %v728, %v750
          %v763 = vadd.f32 %v729, %v750
          %v764 = vadd.f32 %v730, %v750
          %v765 = vadd.f32 %v731, %v750
          %v766 = vadd.f32 %v732, %v750
          %v767 = vadd.f32 %v733, %v750
          %v768 = vadd.f32 %v734, %v750
          %v769 = vadd.f32 %v735, %v750
          %v770 = vadd.f32 %v736, %v750
          %v771 = vadd.f32 %v737, %v750
          %v772 = vadd.f32 %v738, %v750
          %v773 = vadd.f32 %v739, %v750
          %v774 = vadd.f32 %v740, %v750
          %v775 = vadd.f32 %v741, %v750
          %v776 = vadd.f32 %v742, %v750
          %v777 = vadd.f32 %v743, %v750
          %v778 = vadd.f32 %v744, %v750
          %v779 = vadd.f32 %v745, %v750
          %v780 = vadd.f32 %v746, %v750
          %v781 = vadd.f32 %v747, %v750
          %v782 = vadd.f32 %v748, %v750
          %v783 = vmax.f32 %v751, 0.0
          %v784 = vmax.f32 %v752, 0.0
          %v785 = vmax.f32 %v753, 0.0
          %v786 = vmax.f32 %v754, 0.0
          %v787 = vmax.f32 %v755, 0.0
          %v788 = vmax.f32 %v756, 0.0
          %v789 = vmax.f32 %v757, 0.0
          %v790 = vmax.f32 %v758, 0.0
          %v791 = vmax.f32 %v759, 0.0
          %v792 = vmax.f32 %v760, 0.0
          %v793 = vmax.f32 %v761, 0.0
          %v794 = vmax.f32 %v762, 0.0
          %v795 = vmax.f32 %v763, 0.0
          %v796 = vmax.f32 %v764, 0.0
          %v797 = vmax.f32 %v765, 0.0
          %v798 = vmax.f32 %v766, 0.0
          %v799 = vmax.f32 %v767, 0.0
          %v800 = vmax.f32 %v768, 0.0
          %v801 = vmax.f32 %v769, 0.0
          %v802 = vmax.f32 %v770, 0.0
          %v803 = vmax.f32 %v771, 0.0
          %v804 = vmax.f32 %v772, 0.0
          %v805 = vmax.f32 %v773, 0.0
          %v806 = vmax.f32 %v774, 0.0
          %v807 = vmax.f32 %v775, 0.0
          %v808 = vmax.f32 %v776, 0.0
          %v809 = vmax.f32 %v777, 0.0
          %v810 = vmax.f32 %v778, 0.0
          %v811 = vmax.f32 %v779, 0.0
          %v812 = vmax.f32 %v780, 0.0
          %v813 = vmax.f32 %v781, 0.0
          %v814 = vmax.f32 %v782, 0.0
          %815 = vst [vmem:[%s263] sm:$0xff] %v783
          %816 = vst [vmem:[%s263 + $0x8] sm:$0xff] %v784
          %817 = vst [vmem:[%s263 + $0x10] sm:$0xff] %v785
          %818 = vst [vmem:[%s263 + $0x18] sm:$0xff] %v786
          %819 = vst [vmem:[%s263 + $0x20] sm:$0xff] %v787
          %820 = vst [vmem:[%s263 + $0x28] sm:$0xff] %v788
          %821 = vst [vmem:[%s263 + $0x30] sm:$0xff] %v789
          %822 = vst [vmem:[%s263 + $0x38] sm:$0xff] %v790
          %823 = vst [vmem:[%s263 + $0x40] sm:$0xff] %v791
          %824 = vst [vmem:[%s263 + $0x48] sm:$0xff] %v792
          %825 = vst [vmem:[%s263 + $0x50] sm:$0xff] %v793
          %826 = vst [vmem:[%s263 + $0x58] sm:$0xff] %v794
          %827 = vst [vmem:[%s263 + $0x60] sm:$0xff] %v795
          %828 = vst [vmem:[%s263 + $0x68] sm:$0xff] %v796
          %829 = vst [vmem:[%s263 + $0x70] sm:$0xff] %v797
          %830 = vst [vmem:[%s263 + $0x78] sm:$0xff] %v798
          %831 = vst [vmem:[%s263 + $0x80] sm:$0xff] %v799
          %832 = vst [vmem:[%s263 + $0x88] sm:$0xff] %v800
          %833 = vst [vmem:[%s263 + $0x90] sm:$0xff] %v801
          %834 = vst [vmem:[%s263 + $0x98] sm:$0xff] %v802
          %835 = vst [vmem:[%s263 + $0xa0] sm:$0xff] %v803
          %836 = vst [vmem:[%s263 + $0xa8] sm:$0xff] %v804
          %837 = vst [vmem:[%s263 + $0xb0] sm:$0xff] %v805
          %838 = vst [vmem:[%s263 + $0xb8] sm:$0xff] %v806
          %839 = vst [vmem:[%s263 + $0xc0] sm:$0xff] %v807
          %840 = vst [vmem:[%s263 + $0xc8] sm:$0xff] %v808
          %841 = vst [vmem:[%s263 + $0xd0] sm:$0xff] %v809
          %842 = vst [vmem:[%s263 + $0xd8] sm:$0xff] %v810
          %843 = vst [vmem:[%s263 + $0xe0] sm:$0xff] %v811
          %844 = vst [vmem:[%s263 + $0xe8] sm:$0xff] %v812
          %845 = vst [vmem:[%s263 + $0xf0] sm:$0xff] %v813
          %846 = vst [vmem:[%s263 + $0xf8] sm:$0xff] %v814
        $region52: #{tpu_custom_call.1} parent=31 // pred_fallthru
          _
        %s847 = sand.u32 %s132, 1
        %s848 = scalar_lea.sflag [#allocation5], %s847
        %s849 = sand.u32 %s132, 1
        %s850 = smul.addr %s849, 256
        %s851 = scalar_lea.vmem [#allocation9], %s850
        // Predicated region
        $region53: #{tpu_custom_call.1} parent=31 // pred_check
          %p852 = pneg %p142
        $region54: #{tpu_custom_call.1} parent=31 // pred_check_branch
          %854 = sbr.rel (%p852) target = $region56
        $region55: #{tpu_custom_call.1} parent=31 // pred_region
          %s855 = smul.u32 32, %s26
          %857 = vsyncadd %s848, 0
          %s858 = sadd.s32 %s27, %s855
          %s859 = smul.addr %s858, 8
          %s860 = scalar_lea.hbm %s3, %s859
          %s861 = sshll.u32 %s851, 4
          %s862 = int_to_ptr.vmem [resolvable:$true] %s861
          %s863 = sshll.u32 %s860, 4
          %s864 = int_to_ptr.hbm [resolvable:$true] %s863
          %869 = dma.vmem_to_hbm [thread:$0]  %s862, 4096, %s864, %s848, 128, 128, 8
        $region56: #{tpu_custom_call.1} parent=31 // pred_fallthru
          _
      $region32: #{tpu_custom_call.1} parent=5 // pred_fallthru
        _
      %p870 = scmp.le.s32.totalorder 2, %s16
      // Predicated region
      $region57: #{tpu_custom_call.1} parent=5 // pred_check
        %p871 = pneg %p870
      $region58: #{tpu_custom_call.1} parent=5 // pred_check_branch
        %873 = sbr.rel (%p871) target = $region60
      $region59: #{tpu_custom_call.1} parent=5 // pred_region
        %s874 = ssub.s32 %s16, 2
        // Predicated region
        $region61: #{tpu_custom_call.1} parent=59 // pred_check
          %p875 = pneg %p148
        $region62: #{tpu_custom_call.1} parent=59 // pred_check_branch
          %877 = sbr.rel (%p875) target = $region64
        $region63: #{tpu_custom_call.1} parent=59 // pred_region
          %s878 = sand.u32 %s133, 1
          %s879 = scalar_lea.sflag [#allocation5], %s878
          %s880 = sand.u32 %s133, 1
          %s881 = smul.addr %s880, 256
          %s882 = scalar_lea.vmem [#allocation9], %s881
          %884 = dma.done %s879, 4096
        $region64: #{tpu_custom_call.1} parent=59 // pred_fallthru
          _
      $region60: #{tpu_custom_call.1} parent=5 // pred_fallthru
        _
    $region6: #{tpu_custom_call.1} parent=1 // loop_footer
      %s20 = sadd.s32 1, %s16
    $region7: #{tpu_custom_call.1} parent=1 // loop_footer_branch
      %15 = sbr.rel target = $region3
    $region8: #{tpu_custom_call.1} parent=1 // loop_exit
      _
    %885 = vsyncpa [#allocation4], 1
    %s886 = scalar_lea.sflag [#allocation4], 1
    %887 = vsyncpa %s886, 1
    %888 = vsyncpa [#allocation7], 1
    %889 = vsyncpa [#allocation5], 1
    %s890 = scalar_lea.sflag [#allocation5], 1
    %891 = vsyncpa %s890, 1

</llo_original>
